<compile_context>
chip_gen: v7x
topology: tpu7x:2x2x1
jax: 0.10.0
libtpu: 0.0.40
codegen_flags: <defaults>
</compile_context>

<pallas_src>
import jax
import jax.numpy as jnp
from jax import lax
from jax.experimental import pallas as pl
from jax.experimental.pallas import tpu as pltpu

EPS = 1e-5


def resnet_block_kernel(
    xf_ref,    # (N, D)   f32   full x (for Linear1)
    xr_ref,    # (N, tn)  f32   residual slice of x for this output tile
    w1_ref,    # (D, tk)  bf16  Linear1 weight column tile (pre-transposed)
    b1_ref,    # (1, tk)  f32
    g1_ref,    # (1, tk)  f32   BN1 gamma
    be1_ref,   # (1, tk)  f32   BN1 beta
    w2_ref,    # (tk, tn) bf16  Linear2 weight tile (pre-transposed)
    b2_ref,    # (1, tn)  f32
    g2_ref,    # (1, tn)  f32   BN2 gamma
    be2_ref,   # (1, tn)  f32   BN2 beta
    a1_ref,    # (1, 1)   f32   SMEM PReLU1 slope
    a2_ref,    # (1, 1)   f32   SMEM PReLU2 slope
    o_ref,     # (N, tn)  f32   output tile
    acc_ref,   # (N, tn)  f32   VMEM scratch accumulator
):
    k = pl.program_id(1)
    n = xf_ref.shape[0]
    inv_n = 1.0 / n

    @pl.when(k == 0)
    def _init():
        acc_ref[...] = jnp.zeros_like(acc_ref)

    # ---- Linear1 (hidden-feature tile): (N, D) @ (D, tk), bf16 in / f32 acc ----
    h = jnp.dot(xf_ref[...].astype(jnp.bfloat16), w1_ref[...],
                preferred_element_type=jnp.float32) + b1_ref[...]

    # ---- BN1: training-mode batch stats (exact per-feature; full batch resident) ----
    mu = jnp.sum(h, axis=0, keepdims=True) * inv_n
    d = h - mu
    var = jnp.sum(d * d, axis=0, keepdims=True) * inv_n
    h = d * (lax.rsqrt(var + EPS) * g1_ref[...]) + be1_ref[...]

    # ---- PReLU1 (single shared slope) ----
    a1 = a1_ref[0, 0]
    h = jnp.where(h > 0, h, a1 * h)

    # ---- Linear2 partial product accumulated in f32 VMEM scratch ----
    acc_ref[...] += jnp.dot(h.astype(jnp.bfloat16), w2_ref[...],
                            preferred_element_type=jnp.float32)

    # ---- finalize on last hidden tile: bias2, BN2, PReLU2, residual ----
    @pl.when(k == pl.num_programs(1) - 1)
    def _finalize():
        h2 = acc_ref[...] + b2_ref[...]
        mu2 = jnp.sum(h2, axis=0, keepdims=True) * inv_n
        d2 = h2 - mu2
        var2 = jnp.sum(d2 * d2, axis=0, keepdims=True) * inv_n
        h2 = d2 * (lax.rsqrt(var2 + EPS) * g2_ref[...]) + be2_ref[...]
        a2 = a2_ref[0, 0]
        h2 = jnp.where(h2 > 0, h2, a2 * h2)
        o_ref[...] = (xr_ref[...].astype(jnp.float32) + h2).astype(o_ref.dtype)


def prepare_params(p):
    """One-time layout prep (hoisted out of the forward): transpose weights to
    (in, out) layout, cast them to bf16 for MXU streaming, reshape per-feature
    vectors to (1, F) and the PReLU slopes to (1, 1) for SMEM."""
    return {
        "w1_t": jnp.asarray(p["w1"].T, jnp.bfloat16),          # (D, 2D)
        "b1": p["b1"].reshape(1, -1).astype(jnp.float32),
        "g1": p["g1"].reshape(1, -1).astype(jnp.float32),
        "be1": p["be1"].reshape(1, -1).astype(jnp.float32),
        "w2_t": jnp.asarray(p["w2"].T, jnp.bfloat16),           # (2D, D)
        "b2": p["b2"].reshape(1, -1).astype(jnp.float32),
        "g2": p["g2"].reshape(1, -1).astype(jnp.float32),
        "be2": p["be2"].reshape(1, -1).astype(jnp.float32),
        "a1": p["a1"].reshape(1, 1).astype(jnp.float32),
        "a2": p["a2"].reshape(1, 1).astype(jnp.float32),
    }


def resnet_block(x, prepared, *, tk=256, tn=256):
    """x: (N, D) float32. prepared: output of prepare_params.
    tk tiles the hidden axis (2*D, reduction); tn tiles the output feature axis D.
    Tiles of 256-512 keep double-buffered weight DMA well inside the v7x 64 MiB
    VMEM budget at large D while staying lane-dense (multiples of 128)."""
    N, D = x.shape
    H = 2 * D
    # TODO(synk): for feature dims not multiple of 128 / batch not multiple of 8,
    # pad in the wrapper (BN over zero-padded hidden features is still exact).
    assert N % 8 == 0 and D % 128 == 0, (
        "pad batch to a multiple of 8 sublanes and features to a multiple of 128 lanes")
    tk = min(tk, H)
    tn = min(tn, D)
    assert H % tk == 0 and D % tn == 0 and tk % 128 == 0 and tn % 128 == 0
    num_j, num_k = D // tn, H // tk

    hvec = lambda: pl.BlockSpec((1, tk), lambda j, k: (0, k))   # per-hidden-feature vecs
    ovec = lambda: pl.BlockSpec((1, tn), lambda j, k: (0, j))   # per-output-feature vecs
    sscalar = lambda: pl.BlockSpec((1, 1), lambda j, k: (0, 0),
                                   memory_space=pltpu.SMEM)

    out = pl.pallas_call(
        resnet_block_kernel,
        out_shape=jax.ShapeDtypeStruct((N, D), x.dtype),
        grid=(num_j, num_k),
        in_specs=[
            pl.BlockSpec((N, D), lambda j, k: (0, 0)),      # x (full, Linear1 input)
            pl.BlockSpec((N, tn), lambda j, k: (0, j)),     # x residual slice
            pl.BlockSpec((D, tk), lambda j, k: (0, k)),     # w1 column tile (bf16)
            hvec(), hvec(), hvec(),                         # b1, g1, be1
            pl.BlockSpec((tk, tn), lambda j, k: (k, j)),    # w2 tile (bf16)
            ovec(), ovec(), ovec(),                         # b2, g2, be2
            sscalar(), sscalar(),                           # a1, a2 (SMEM scalars)
        ],
        out_specs=pl.BlockSpec((N, tn), lambda j, k: (0, j)),
        scratch_shapes=[pltpu.VMEM((N, tn), jnp.float32)],
        compiler_params=pltpu.CompilerParams(
            dimension_semantics=("parallel", "arbitrary"),
            vmem_limit_bytes=48 * 1024 * 1024,
        ),
    )(x, x,
      prepared["w1_t"], prepared["b1"], prepared["g1"], prepared["be1"],
      prepared["w2_t"], prepared["b2"], prepared["g2"], prepared["be2"],
      prepared["a1"], prepared["a2"])
    return out


def init_params(key, dim):
    """Deterministic synthetic init matching the PyTorch module's shapes."""
    k1, k2, k3, k4 = jax.random.split(key, 4)
    hid = 2 * dim
    bound1 = 1.0 / jnp.sqrt(dim)
    w1 = jax.random.uniform(k1, (hid, dim), jnp.float32, -bound1, bound1)
    b1 = jax.random.uniform(k2, (hid,), jnp.float32, -bound1, bound1)
    bound2 = 1.0 / jnp.sqrt(hid)
    w2 = jax.random.uniform(k3, (dim, hid), jnp.float32, -bound2, bound2)
    b2 = jax.random.uniform(k4, (dim,), jnp.float32, -bound2, bound2)
    return {
        "w1": w1, "b1": b1,
        "g1": jnp.ones((hid,), jnp.float32), "be1": jnp.zeros((hid,), jnp.float32),
        "a1": jnp.array(0.25, jnp.float32),
        "w2": w2, "b2": b2,
        "g2": jnp.ones((dim,), jnp.float32), "be2": jnp.zeros((dim,), jnp.float32),
        "a2": jnp.array(0.25, jnp.float32),
    }


def resnet_block_ref(x, p, matmul_dtype=jnp.float32):
    """Pure-JAX reference mirroring PyTorch training-mode-BN semantics.
    matmul_dtype=bfloat16 mimics the kernel's MXU input precision."""
    def mm(a, w):  # a @ w.T with f32 accumulation
        return jnp.dot(a.astype(matmul_dtype), w.T.astype(matmul_dtype),
                       preferred_element_type=jnp.float32)

    def bn(h, g, b):
        mu = jnp.mean(h, axis=0, keepdims=True)
        var = jnp.mean((h - mu) ** 2, axis=0, keepdims=True)
        return (h - mu) * lax.rsqrt(var + EPS) * g + b

    def prelu(h, a):
        return jnp.where(h > 0, h, a * h)

    h = mm(x, p["w1"]) + p["b1"]
    h = prelu(bn(h, p["g1"], p["be1"]), p["a1"])
    h = mm(h, p["w2"]) + p["b2"]
    h = prelu(bn(h, p["g2"], p["be2"]), p["a2"])
    return x + h


if __name__ == "__main__":
    N, DIM = 8, 256            # batch multiple of 8 sublanes, features multiple of 128 lanes
    key = jax.random.PRNGKey(0)
    kx, kp = jax.random.split(key)
    x = jax.random.normal(kx, (N, DIM), jnp.float32)
    params = init_params(kp, DIM)
    prepared = prepare_params(params)

    # tk=256, tn=128 -> grid (2, 2): exercises both the parallel output-feature
    # axis and the accumulated hidden-reduction axis.
    out = resnet_block(x, prepared, tk=256, tn=128)
    out = jax.block_until_ready(out)

    ref_bf16 = resnet_block_ref(x, params, matmul_dtype=jnp.bfloat16)
    ref_f32 = resnet_block_ref(x, params, matmul_dtype=jnp.float32)

    assert out.shape == (N, DIM)
    assert jnp.allclose(out, ref_bf16, atol=2e-2, rtol=2e-2), (
        f"bf16-ref max abs diff {jnp.max(jnp.abs(out - ref_bf16))}"
    )
    assert jnp.allclose(out, ref_f32, atol=1e-1, rtol=1e-1), (
        f"f32-ref max abs diff {jnp.max(jnp.abs(out - ref_f32))}"
    )
    print("KERNEL_OK")
</pallas_src>

<mosaic_0001>
module attributes {stable_mosaic.version = 11 : i64} {
  func.func @resnet_block_kernel(%arg0: i32, %arg1: i32, %arg2: memref<8x256xf32, #tpu.memory_space<vmem>>, %arg3: memref<8x128xf32, #tpu.memory_space<vmem>>, %arg4: memref<256x256xbf16, #tpu.memory_space<vmem>>, %arg5: memref<1x256xf32, #tpu.memory_space<vmem>>, %arg6: memref<1x256xf32, #tpu.memory_space<vmem>>, %arg7: memref<1x256xf32, #tpu.memory_space<vmem>>, %arg8: memref<256x128xbf16, #tpu.memory_space<vmem>>, %arg9: memref<1x128xf32, #tpu.memory_space<vmem>>, %arg10: memref<1x128xf32, #tpu.memory_space<vmem>>, %arg11: memref<1x128xf32, #tpu.memory_space<vmem>>, %arg12: memref<1x1xf32, #tpu.memory_space<smem>>, %arg13: memref<1x1xf32, #tpu.memory_space<smem>>, %arg14: memref<8x128xf32, #tpu.memory_space<vmem>>, %arg15: memref<8x128xf32, #tpu.memory_space<vmem>>) attributes {dimension_semantics = [#tpu.dimension_semantics<parallel>, #tpu.dimension_semantics<arbitrary>], iteration_bounds = array<i64: 2, 2>, scalar_prefetch = 0 : i64, scratch_operands = 1 : i64, tpu.core_type = #tpu.core_type<tc>, window_params = [{pipeline_mode = #tpu.pipeline_mode<synchronous>, transform_indices = @transform_0, window_bounds = array<i64: 8, 256>}, {transform_indices = @transform_1, window_bounds = array<i64: 8, 128>}, {transform_indices = @transform_2, window_bounds = array<i64: 256, 256>}, {transform_indices = @transform_3, window_bounds = array<i64: 1, 256>}, {transform_indices = @transform_4, window_bounds = array<i64: 1, 256>}, {transform_indices = @transform_5, window_bounds = array<i64: 1, 256>}, {transform_indices = @transform_6, window_bounds = array<i64: 256, 128>}, {transform_indices = @transform_7, window_bounds = array<i64: 1, 128>}, {transform_indices = @transform_8, window_bounds = array<i64: 1, 128>}, {transform_indices = @transform_9, window_bounds = array<i64: 1, 128>}, {transform_indices = @transform_10, window_bounds = array<i64: 1, 1>}, {transform_indices = @transform_11, window_bounds = array<i64: 1, 1>}, {transform_indices = @transform_12, window_bounds = array<i64: 8, 128>}]} {
    %c0_i32 = arith.constant 0 : i32
    %0 = arith.cmpi eq, %arg1, %c0_i32 : i32
    %1 = arith.extui %0 : i1 to i32
    %c0_i32_0 = arith.constant 0 : i32
    %2 = arith.cmpi ne, %1, %c0_i32_0 : i32
    scf.if %2 {
      %cst_26 = arith.constant 0.000000e+00 : f32
      %46 = vector.broadcast %cst_26 : f32 to vector<8x128xf32>
      %c0_27 = arith.constant 0 : index
      %c0_28 = arith.constant 0 : index
      %47 = vector.load %arg15[%c0_27, %c0_28] : memref<8x128xf32, #tpu.memory_space<vmem>>, vector<8x128xf32>
      tpu.vector_store %arg15[%c0_27, %c0_28], %46 {strides = array<i32>} : memref<8x128xf32, #tpu.memory_space<vmem>>, vector<8x128xf32>,
    } else {
    }
    %c0 = arith.constant 0 : index
    %c0_1 = arith.constant 0 : index
    %3 = vector.load %arg2[%c0, %c0_1] : memref<8x256xf32, #tpu.memory_space<vmem>>, vector<8x256xf32>
    %4 = arith.truncf %3 : vector<8x256xf32> to vector<8x256xbf16>
    %c0_2 = arith.constant 0 : index
    %c0_3 = arith.constant 0 : index
    %5 = vector.load %arg4[%c0_2, %c0_3] : memref<256x256xbf16, #tpu.memory_space<vmem>>, vector<256x256xbf16>
    %cst = arith.constant dense<0.000000e+00> : vector<8x256xf32>
    %6 = tpu.matmul %4, %5, %cst {dimension_numbers = #tpu.dot_dimension_numbers<[1], [0], [0], [1], [0, 0, 1, 1], [], []>} : vector<8x256xbf16>, vector<256x256xbf16>, vector<8x256xf32> -> vector<8x256xf32>
    %c0_4 = arith.constant 0 : index
    %c0_5 = arith.constant 0 : index
    %7 = vector.load %arg5[%c0_4, %c0_5] : memref<1x256xf32, #tpu.memory_space<vmem>>, vector<1x256xf32>
    %8 = vector.broadcast %7 : vector<1x256xf32> to vector<8x256xf32>
    %9 = arith.addf %6, %8 : vector<8x256xf32>
    %cst_6 = arith.constant dense<0.000000e+00> : vector<256xf32>
    %10 = vector.multi_reduction <add>, %9, %cst_6 [0] : vector<8x256xf32> to vector<256xf32>
    %11 = vector.shape_cast %10 : vector<256xf32> to vector<1x256xf32>
    %cst_7 = arith.constant 1.250000e-01 : f32
    %12 = vector.broadcast %cst_7 : f32 to vector<1x256xf32>
    %13 = arith.mulf %11, %12 : vector<1x256xf32>
    %14 = vector.broadcast %13 : vector<1x256xf32> to vector<8x256xf32>
    %15 = arith.subf %9, %14 : vector<8x256xf32>
    %16 = arith.mulf %15, %15 : vector<8x256xf32>
    %cst_8 = arith.constant dense<0.000000e+00> : vector<256xf32>
    %17 = vector.multi_reduction <add>, %16, %cst_8 [0] : vector<8x256xf32> to vector<256xf32>
    %18 = vector.shape_cast %17 : vector<256xf32> to vector<1x256xf32>
    %cst_9 = arith.constant 1.250000e-01 : f32
    %19 = vector.broadcast %cst_9 : f32 to vector<1x256xf32>
    %20 = arith.mulf %18, %19 : vector<1x256xf32>
    %cst_10 = arith.constant 9.99999974E-6 : f32
    %21 = vector.broadcast %cst_10 : f32 to vector<1x256xf32>
    %22 = arith.addf %20, %21 : vector<1x256xf32>
    %23 = math.rsqrt %22 : vector<1x256xf32>
    %c0_11 = arith.constant 0 : index
    %c0_12 = arith.constant 0 : index
    %24 = vector.load %arg6[%c0_11, %c0_12] : memref<1x256xf32, #tpu.memory_space<vmem>>, vector<1x256xf32>
    %25 = arith.mulf %23, %24 : vector<1x256xf32>
    %26 = vector.broadcast %25 : vector<1x256xf32> to vector<8x256xf32>
    %27 = arith.mulf %15, %26 : vector<8x256xf32>
    %c0_13 = arith.constant 0 : index
    %c0_14 = arith.constant 0 : index
    %28 = vector.load %arg7[%c0_13, %c0_14] : memref<1x256xf32, #tpu.memory_space<vmem>>, vector<1x256xf32>
    %29 = vector.broadcast %28 : vector<1x256xf32> to vector<8x256xf32>
    %30 = arith.addf %27, %29 : vector<8x256xf32>
    %c0_15 = arith.constant 0 : index
    %c0_16 = arith.constant 0 : index
    %31 = memref.load %arg12[%c0_15, %c0_16] : memref<1x1xf32, #tpu.memory_space<smem>>
    %cst_17 = arith.constant 0.000000e+00 : f32
    %32 = vector.broadcast %cst_17 : f32 to vector<8x256xf32>
    %33 = arith.cmpf ogt, %30, %32 : vector<8x256xf32>
    %34 = vector.broadcast %31 : f32 to vector<8x256xf32>
    %35 = arith.mulf %34, %30 : vector<8x256xf32>
    %36 = arith.select %33, %30, %35 : vector<8x256xi1>, vector<8x256xf32>
    %c0_18 = arith.constant 0 : index
    %c0_19 = arith.constant 0 : index
    %37 = vector.load %arg15[%c0_18, %c0_19] : memref<8x128xf32, #tpu.memory_space<vmem>>, vector<8x128xf32>
    %38 = arith.truncf %36 : vector<8x256xf32> to vector<8x256xbf16>
    %c0_20 = arith.constant 0 : index
    %c0_21 = arith.constant 0 : index
    %39 = vector.load %arg8[%c0_20, %c0_21] : memref<256x128xbf16, #tpu.memory_space<vmem>>, vector<256x128xbf16>
    %cst_22 = arith.constant dense<0.000000e+00> : vector<8x128xf32>
    %40 = tpu.matmul %38, %39, %cst_22 {dimension_numbers = #tpu.dot_dimension_numbers<[1], [0], [0], [1], [0, 0, 1, 1], [], []>} : vector<8x256xbf16>, vector<256x128xbf16>, vector<8x128xf32> -> vector<8x128xf32>
    %41 = arith.addf %37, %40 : vector<8x128xf32>
    %c0_23 = arith.constant 0 : index
    %c0_24 = arith.constant 0 : index
    %42 = vector.load %arg15[%c0_23, %c0_24] : memref<8x128xf32, #tpu.memory_space<vmem>>, vector<8x128xf32>
    tpu.vector_store %arg15[%c0_23, %c0_24], %41 {strides = array<i32>} : memref<8x128xf32, #tpu.memory_space<vmem>>, vector<8x128xf32>,
    %c1_i32 = arith.constant 1 : i32
    %43 = arith.cmpi eq, %arg1, %c1_i32 : i32
    %44 = arith.extui %43 : i1 to i32
    %c0_i32_25 = arith.constant 0 : i32
    %45 = arith.cmpi ne, %44, %c0_i32_25 : i32
    scf.if %45 {
      %c0_26 = arith.constant 0 : index
      %c0_27 = arith.constant 0 : index
      %46 = vector.load %arg15[%c0_26, %c0_27] : memref<8x128xf32, #tpu.memory_space<vmem>>, vector<8x128xf32>
      %c0_28 = arith.constant 0 : index
      %c0_29 = arith.constant 0 : index
      %47 = vector.load %arg9[%c0_28, %c0_29] : memref<1x128xf32, #tpu.memory_space<vmem>>, vector<1x128xf32>
      %48 = vector.broadcast %47 : vector<1x128xf32> to vector<8x128xf32>
      %49 = arith.addf %46, %48 : vector<8x128xf32>
      %cst_30 = arith.constant dense<0.000000e+00> : vector<128xf32>
      %50 = vector.multi_reduction <add>, %49, %cst_30 [0] : vector<8x128xf32> to vector<128xf32>
      %51 = vector.shape_cast %50 : vector<128xf32> to vector<1x128xf32>
      %cst_31 = arith.constant 1.250000e-01 : f32
      %52 = vector.broadcast %cst_31 : f32 to vector<1x128xf32>
      %53 = arith.mulf %51, %52 : vector<1x128xf32>
      %54 = vector.broadcast %53 : vector<1x128xf32> to vector<8x128xf32>
      %55 = arith.subf %49, %54 : vector<8x128xf32>
      %56 = arith.mulf %55, %55 : vector<8x128xf32>
      %cst_32 = arith.constant dense<0.000000e+00> : vector<128xf32>
      %57 = vector.multi_reduction <add>, %56, %cst_32 [0] : vector<8x128xf32> to vector<128xf32>
      %58 = vector.shape_cast %57 : vector<128xf32> to vector<1x128xf32>
      %cst_33 = arith.constant 1.250000e-01 : f32
      %59 = vector.broadcast %cst_33 : f32 to vector<1x128xf32>
      %60 = arith.mulf %58, %59 : vector<1x128xf32>
      %cst_34 = arith.constant 9.99999974E-6 : f32
      %61 = vector.broadcast %cst_34 : f32 to vector<1x128xf32>
      %62 = arith.addf %60, %61 : vector<1x128xf32>
      %63 = math.rsqrt %62 : vector<1x128xf32>
      %c0_35 = arith.constant 0 : index
      %c0_36 = arith.constant 0 : index
      %64 = vector.load %arg10[%c0_35, %c0_36] : memref<1x128xf32, #tpu.memory_space<vmem>>, vector<1x128xf32>
      %65 = arith.mulf %63, %64 : vector<1x128xf32>
      %66 = vector.broadcast %65 : vector<1x128xf32> to vector<8x128xf32>
      %67 = arith.mulf %55, %66 : vector<8x128xf32>
      %c0_37 = arith.constant 0 : index
      %c0_38 = arith.constant 0 : index
      %68 = vector.load %arg11[%c0_37, %c0_38] : memref<1x128xf32, #tpu.memory_space<vmem>>, vector<1x128xf32>
      %69 = vector.broadcast %68 : vector<1x128xf32> to vector<8x128xf32>
      %70 = arith.addf %67, %69 : vector<8x128xf32>
      %c0_39 = arith.constant 0 : index
      %c0_40 = arith.constant 0 : index
      %71 = memref.load %arg13[%c0_39, %c0_40] : memref<1x1xf32, #tpu.memory_space<smem>>
      %cst_41 = arith.constant 0.000000e+00 : f32
      %72 = vector.broadcast %cst_41 : f32 to vector<8x128xf32>
      %73 = arith.cmpf ogt, %70, %72 : vector<8x128xf32>
      %74 = vector.broadcast %71 : f32 to vector<8x128xf32>
      %75 = arith.mulf %74, %70 : vector<8x128xf32>
      %76 = arith.select %73, %70, %75 : vector<8x128xi1>, vector<8x128xf32>
      %c0_42 = arith.constant 0 : index
      %c0_43 = arith.constant 0 : index
      %77 = vector.load %arg3[%c0_42, %c0_43] : memref<8x128xf32, #tpu.memory_space<vmem>>, vector<8x128xf32>
      %78 = arith.addf %77, %76 : vector<8x128xf32>
      %c0_44 = arith.constant 0 : index
      %c0_45 = arith.constant 0 : index
      %79 = vector.load %arg14[%c0_44, %c0_45] : memref<8x128xf32, #tpu.memory_space<vmem>>, vector<8x128xf32>
      tpu.vector_store %arg14[%c0_44, %c0_45], %78 {strides = array<i32>} : memref<8x128xf32, #tpu.memory_space<vmem>>, vector<8x128xf32>,
    } else {
    }
    return
  }
  func.func @transform_0(%arg0: i32, %arg1: i32) -> (i32, i32) {
    %c0_i32 = arith.constant 0 : i32
    %c0_i32_0 = arith.constant 0 : i32
    %c0_i32_1 = arith.constant 0 : i32
    return %c0_i32, %c0_i32_0 : i32, i32
  }
  func.func @transform_1(%arg0: i32, %arg1: i32) -> (i32, i32) {
    %c0_i32 = arith.constant 0 : i32
    %c0_i32_0 = arith.constant 0 : i32
    return %c0_i32, %arg0 : i32, i32
  }
  func.func @transform_2(%arg0: i32, %arg1: i32) -> (i32, i32) {
    %c0_i32 = arith.constant 0 : i32
    %c0_i32_0 = arith.constant 0 : i32
    return %c0_i32, %arg1 : i32, i32
  }
  func.func @transform_3(%arg0: i32, %arg1: i32) -> (i32, i32) {
    %c0_i32 = arith.constant 0 : i32
    %c0_i32_0 = arith.constant 0 : i32
    return %c0_i32, %arg1 : i32, i32
  }
  func.func @transform_4(%arg0: i32, %arg1: i32) -> (i32, i32) {
    %c0_i32 = arith.constant 0 : i32
    %c0_i32_0 = arith.constant 0 : i32
    return %c0_i32, %arg1 : i32, i32
  }
  func.func @transform_5(%arg0: i32, %arg1: i32) -> (i32, i32) {
    %c0_i32 = arith.constant 0 : i32
    %c0_i32_0 = arith.constant 0 : i32
    return %c0_i32, %arg1 : i32, i32
  }
  func.func @transform_6(%arg0: i32, %arg1: i32) -> (i32, i32) {
    %c0_i32 = arith.constant 0 : i32
    return %arg1, %arg0 : i32, i32
  }
  func.func @transform_7(%arg0: i32, %arg1: i32) -> (i32, i32) {
    %c0_i32 = arith.constant 0 : i32
    %c0_i32_0 = arith.constant 0 : i32
    return %c0_i32, %arg0 : i32, i32
  }
  func.func @transform_8(%arg0: i32, %arg1: i32) -> (i32, i32) {
    %c0_i32 = arith.constant 0 : i32
    %c0_i32_0 = arith.constant 0 : i32
    return %c0_i32, %arg0 : i32, i32
  }
  func.func @transform_9(%arg0: i32, %arg1: i32) -> (i32, i32) {
    %c0_i32 = arith.constant 0 : i32
    %c0_i32_0 = arith.constant 0 : i32
    return %c0_i32, %arg0 : i32, i32
  }
  func.func @transform_10(%arg0: i32, %arg1: i32) -> (i32, i32) {
    %c0_i32 = arith.constant 0 : i32
    %c0_i32_0 = arith.constant 0 : i32
    %c0_i32_1 = arith.constant 0 : i32
    return %c0_i32, %c0_i32_0 : i32, i32
  }
  func.func @transform_11(%arg0: i32, %arg1: i32) -> (i32, i32) {
    %c0_i32 = arith.constant 0 : i32
    %c0_i32_0 = arith.constant 0 : i32
    %c0_i32_1 = arith.constant 0 : i32
    return %c0_i32, %c0_i32_0 : i32, i32
  }
  func.func @transform_12(%arg0: i32, %arg1: i32) -> (i32, i32) {
    %c0_i32 = arith.constant 0 : i32
    %c0_i32_0 = arith.constant 0 : i32
    return %c0_i32, %arg0 : i32, i32
  }
}

</mosaic_0001>

<llo_original>
// kernel: tpu_custom_call.1
$region0: #{tpu_custom_call.1}
  #allocation0 [shape = 'u32[]', space=smem, size = 0x4, offset = 0x4, fixed_abs, tag = 'smem constant byte address 0x4 - core index']
  #allocation1 [shape = 'u32[144,128]{1,0:T(1,128)}', space=vmem, size = 0x12000, scoped, tag = 'internal scratch']
  #allocation2 [shape = 'f32[8,128]{1,0:T(8,128)}', space=vmem, size = 0x1000, scoped, tag = 'scratch operand']
  #allocation3 [shape = 'f32[1,1]{1,0:T(1,128)S(6)}', space=smem, size = 0x200, scoped, tag = 'scoped memory for tpu_custom_call.1']
  #allocation4 [shape = 'f32[1,1]{1,0:T(1,128)S(6)}', space=smem, size = 0x200, scoped, tag = 'scoped memory for tpu_custom_call.1']
  %s0 = inlined_call_operand.hbm [shape: f32[8,256], index: 0, kind: input, shape index: {}]
  %s1 = inlined_call_operand.hbm [shape: f32[8,256], index: 1, kind: input, shape index: {}]
  %s2 = inlined_call_operand.hbm [shape: bf16[256,512], index: 2, kind: input, shape index: {}]
  %s3 = inlined_call_operand.vmem [shape: f32[1,512], index: 3, kind: input, shape index: {}]
  %s4 = inlined_call_operand.vmem [shape: f32[1,512], index: 4, kind: input, shape index: {}]
  %s5 = inlined_call_operand.vmem [shape: f32[1,512], index: 5, kind: input, shape index: {}]
  %s6 = inlined_call_operand.hbm [shape: bf16[512,256], index: 6, kind: input, shape index: {}]
  %s7 = inlined_call_operand.vmem [shape: f32[1,256], index: 7, kind: input, shape index: {}]
  %s8 = inlined_call_operand.vmem [shape: f32[1,256], index: 8, kind: input, shape index: {}]
  %s9 = inlined_call_operand.vmem [shape: f32[1,256], index: 9, kind: input, shape index: {}]
  %s10 = inlined_call_operand.<no memory space> [shape: f32[1,1], index: 10, kind: input, shape index: {}]
  %s11 = inlined_call_operand.<no memory space> [shape: f32[1,1], index: 11, kind: input, shape index: {}]
  %s12 = inlined_call_operand.hbm [shape: f32[8,256], index: 12, kind: output, shape index: {}]
  %s13 = sld [smem:[#allocation0]]
  $region105: #{tpu_custom_call.1} parent=0
    _
  %s15 = ssub.s32 1, %s13
  %s16 = scalar_select 0, %s15, %s13
  %17 = sst [smem:[#allocation3]] %s10
  %18 = sst [smem:[#allocation4]] %s11
  $region1: #{tpu_custom_call.1} parent=0
    #allocation5 [shape = 'u8[8192]{0}', space=vmem, size = 0x2000, scoped, tag = 'input window, operand 0, single buffered']
    #allocation6 [shape = 's32[2]{0}', space=sflag, size = 0x8, scoped, tag = 'scoped memory for tpu_custom_call.1']
    #allocation7 [shape = 's32[2]{0}', space=sflag, size = 0x8, scoped, tag = 'scoped memory for tpu_custom_call.1']
    #allocation8 [shape = 'u8[8192]{0}', space=vmem, size = 0x2000, scoped, tag = 'input window, operand 1']
    #allocation9 [shape = 's32[2]{0}', space=sflag, size = 0x8, scoped, tag = 'scoped memory for tpu_custom_call.1']
    #allocation10 [shape = 'u8[262144]{0}', space=vmem, size = 0x40000, scoped, tag = 'input window, operand 2']
    #allocation11 [shape = 'u8[131072]{0}', space=vmem, size = 0x20000, scoped, tag = 'input window, operand 6']
    #allocation12 [shape = 's32[2]{0}', space=sflag, size = 0x8, scoped, tag = 'scoped memory for tpu_custom_call.1']
    #allocation13 [shape = 'u8[8192]{0}', space=vmem, size = 0x2000, scoped, tag = 'output window, operand 0']
    %19 = vsyncpa [#allocation6], 0
    %20 = vsyncpa [#allocation9], 0
    %s21 = scalar_lea.sflag [#allocation9], 1
    %22 = vsyncpa %s21, 0
    %23 = vsyncpa [#allocation12], 0
    %s24 = scalar_lea.sflag [#allocation12], 1
    %25 = vsyncpa %s24, 0
    %26 = vsyncpa [#allocation7], 0
    %s27 = scalar_lea.sflag [#allocation7], 1
    %28 = vsyncpa %s27, 0
    loop: start=0, step=1, limit=6
    $region2: #{tpu_custom_call.1} parent=1 // loop_pre_header
      _
    $region3: #{tpu_custom_call.1} parent=1 // loop_header
      %s30 = sphi 0, %s34
      %p31 = scmp.ge.s32.totalorder %s30, 6
      %s37 = sphi 0, %s49
      %s38 = sphi 0, %s45
      %s39 = sphi 0, %s37
      %s40 = sphi 0, %s38
      %s41 = sphi 0, %s39
      %s42 = sphi 0, %s40
      %s50 = sphi 0, %s50
      %s52 = sphi 0, %s50
      %s53 = sphi 0, %s52
      %s67 = sphi 0, %s53
      %s73 = sphi 0, %s75
      %s76 = sphi 0, %s73
      %s77 = sphi 0, %s76
      %s93 = sphi 0, %s77
      %s99 = sphi 0, %s101
      %s102 = sphi 0, %s99
      %s103 = sphi 0, %s102
      %s119 = sphi 0, %s103
      %s125 = sphi 0, %s127
      %s128 = sphi 0, %s125
      %s129 = sphi 0, %s128
      %s145 = sphi 0, %s129
      %s151 = sphi 0, %s153
      %s154 = sphi 0, %s151
      %s155 = sphi 0, %s154
      %s171 = sphi 0, %s155
      %s177 = sphi 0, %s179
      %s180 = sphi 0, %s177
      %s181 = sphi 0, %s180
      %s197 = sphi 0, %s181
      %s205 = sphi 0, %s207
      %s208 = sphi 0, %s205
      %s209 = sphi 0, %s208
      %s225 = sphi 0, %s209
      %s231 = sphi 0, %s233
      %s234 = sphi 0, %s231
      %s235 = sphi 0, %s234
      %s251 = sphi 0, %s235
      %s257 = sphi 0, %s259
      %s260 = sphi 0, %s257
      %s261 = sphi 0, %s260
      %s277 = sphi 0, %s261
      %s283 = sphi 0, %s285
      %s286 = sphi 0, %s283
      %s287 = sphi 0, %s286
      %s303 = sphi 0, %s287
      %s307 = sphi 0, %s307
      %s309 = sphi 0, %s307
      %s310 = sphi 0, %s309
      %s324 = sphi 0, %s310
      %s328 = sphi 0, %s328
      %s330 = sphi 0, %s328
      %s331 = sphi 0, %s330
      %s345 = sphi 0, %s331
      %s351 = sphi 0, %s353
      %s354 = sphi 0, %s351
      %s355 = sphi 0, %s354
      %s371 = sphi 0, %s355
    $region4: #{tpu_custom_call.1} parent=1 // loop_header_branch
      %33 = sbr.rel (%p31) target = $region8
    $region5: #{tpu_custom_call.1} parent=1 // loop_body
      %s35 = ssub.s32 %s30, 1
      %s36 = ssub.s32 %s30, 2
      %s43 = sadd.s32 1, %s38
      %p44 = scmp.ge.s32.totalorder %s43, 2
      %s45 = scalar_select %p44, 0, %s43
      %s46 = sadd.s32 1, %s37
      %s47 = scalar_select %p44, %s46, %s37
      %p48 = scmp.ge.s32.totalorder %s47, 2
      %s49 = scalar_select %p48, 0, %s47
      %s51 = sadd.s32 %s50, 1
      %p54 = scmp.eq.s32.totalorder %s30, 3
      %p55 = scmp.ne.s32.totalorder %s50, %s52
      %p56 = scmp.eq.s32.totalorder %s30, 0
      %p57 = por %p55, %p56
      %p58 = scmp.ne.s32.totalorder %s50, %s52
      %p59 = scmp.eq.s32.totalorder %s35, 3
      %p60 = por %p58, %p59
      %p61 = scmp.ne.s32.totalorder %s52, %s53
      %p62 = scmp.eq.s32.totalorder %s35, 0
      %p63 = por %p61, %p62
      %p64 = scmp.ne.s32.totalorder %s52, %s53
      %p65 = scmp.eq.s32.totalorder %s36, 3
      %p66 = por %p64, %p65
      %p68 = scmp.ne.s32.totalorder %s53, %s67
      %p69 = scmp.eq.s32.totalorder %s36, 0
      %p70 = por %p68, %p69
      %s71 = ssub.s32 %s37, %s49
      %p72 = scmp.eq.s32.totalorder %s71, 0
      %s74 = sadd.s32 %s73, 1
      %s75 = scalar_select %p72, %s73, %s74
      %p78 = pneg %p72
      %p79 = scmp.eq.s32.totalorder %s30, 3
      %p80 = por %p78, %p79
      %p81 = scmp.ne.s32.totalorder %s73, %s76
      %p82 = scmp.eq.s32.totalorder %s30, 0
      %p83 = por %p81, %p82
      %p84 = scmp.ne.s32.totalorder %s73, %s76
      %p85 = scmp.eq.s32.totalorder %s35, 3
      %p86 = por %p84, %p85
      %p87 = scmp.ne.s32.totalorder %s76, %s77
      %p88 = scmp.eq.s32.totalorder %s35, 0
      %p89 = por %p87, %p88
      %p90 = scmp.ne.s32.totalorder %s76, %s77
      %p91 = scmp.eq.s32.totalorder %s36, 3
      %p92 = por %p90, %p91
      %p94 = scmp.ne.s32.totalorder %s77, %s93
      %p95 = scmp.eq.s32.totalorder %s36, 0
      %p96 = por %p94, %p95
      %s97 = ssub.s32 %s38, %s45
      %p98 = scmp.eq.s32.totalorder %s97, 0
      %s100 = sadd.s32 %s99, 1
      %s101 = scalar_select %p98, %s99, %s100
      %p104 = pneg %p98
      %p105 = scmp.eq.s32.totalorder %s30, 3
      %p106 = por %p104, %p105
      %p107 = scmp.ne.s32.totalorder %s99, %s102
      %p108 = scmp.eq.s32.totalorder %s30, 0
      %p109 = por %p107, %p108
      %p110 = scmp.ne.s32.totalorder %s99, %s102
      %p111 = scmp.eq.s32.totalorder %s35, 3
      %p112 = por %p110, %p111
      %p113 = scmp.ne.s32.totalorder %s102, %s103
      %p114 = scmp.eq.s32.totalorder %s35, 0
      %p115 = por %p113, %p114
      %p116 = scmp.ne.s32.totalorder %s102, %s103
      %p117 = scmp.eq.s32.totalorder %s36, 3
      %p118 = por %p116, %p117
      %p120 = scmp.ne.s32.totalorder %s103, %s119
      %p121 = scmp.eq.s32.totalorder %s36, 0
      %p122 = por %p120, %p121
      %s123 = ssub.s32 %s38, %s45
      %p124 = scmp.eq.s32.totalorder %s123, 0
      %s126 = sadd.s32 %s125, 1
      %s127 = scalar_select %p124, %s125, %s126
      %p130 = pneg %p124
      %p131 = scmp.eq.s32.totalorder %s30, 3
      %p132 = por %p130, %p131
      %p133 = scmp.ne.s32.totalorder %s125, %s128
      %p134 = scmp.eq.s32.totalorder %s30, 0
      %p135 = por %p133, %p134
      %p136 = scmp.ne.s32.totalorder %s125, %s128
      %p137 = scmp.eq.s32.totalorder %s35, 3
      %p138 = por %p136, %p137
      %p139 = scmp.ne.s32.totalorder %s128, %s129
      %p140 = scmp.eq.s32.totalorder %s35, 0
      %p141 = por %p139, %p140
      %p142 = scmp.ne.s32.totalorder %s128, %s129
      %p143 = scmp.eq.s32.totalorder %s36, 3
      %p144 = por %p142, %p143
      %p146 = scmp.ne.s32.totalorder %s129, %s145
      %p147 = scmp.eq.s32.totalorder %s36, 0
      %p148 = por %p146, %p147
      %s149 = ssub.s32 %s38, %s45
      %p150 = scmp.eq.s32.totalorder %s149, 0
      %s152 = sadd.s32 %s151, 1
      %s153 = scalar_select %p150, %s151, %s152
      %p156 = pneg %p150
      %p157 = scmp.eq.s32.totalorder %s30, 3
      %p158 = por %p156, %p157
      %p159 = scmp.ne.s32.totalorder %s151, %s154
      %p160 = scmp.eq.s32.totalorder %s30, 0
      %p161 = por %p159, %p160
      %p162 = scmp.ne.s32.totalorder %s151, %s154
      %p163 = scmp.eq.s32.totalorder %s35, 3
      %p164 = por %p162, %p163
      %p165 = scmp.ne.s32.totalorder %s154, %s155
      %p166 = scmp.eq.s32.totalorder %s35, 0
      %p167 = por %p165, %p166
      %p168 = scmp.ne.s32.totalorder %s154, %s155
      %p169 = scmp.eq.s32.totalorder %s36, 3
      %p170 = por %p168, %p169
      %p172 = scmp.ne.s32.totalorder %s155, %s171
      %p173 = scmp.eq.s32.totalorder %s36, 0
      %p174 = por %p172, %p173
      %s175 = ssub.s32 %s38, %s45
      %p176 = scmp.eq.s32.totalorder %s175, 0
      %s178 = sadd.s32 %s177, 1
      %s179 = scalar_select %p176, %s177, %s178
      %p182 = pneg %p176
      %p183 = scmp.eq.s32.totalorder %s30, 3
      %p184 = por %p182, %p183
      %p185 = scmp.ne.s32.totalorder %s177, %s180
      %p186 = scmp.eq.s32.totalorder %s30, 0
      %p187 = por %p185, %p186
      %p188 = scmp.ne.s32.totalorder %s177, %s180
      %p189 = scmp.eq.s32.totalorder %s35, 3
      %p190 = por %p188, %p189
      %p191 = scmp.ne.s32.totalorder %s180, %s181
      %p192 = scmp.eq.s32.totalorder %s35, 0
      %p193 = por %p191, %p192
      %p194 = scmp.ne.s32.totalorder %s180, %s181
      %p195 = scmp.eq.s32.totalorder %s36, 3
      %p196 = por %p194, %p195
      %p198 = scmp.ne.s32.totalorder %s181, %s197
      %p199 = scmp.eq.s32.totalorder %s36, 0
      %p200 = por %p198, %p199
      %s201 = ssub.s32 %s38, %s45
      %s202 = ssub.s32 %s37, %s49
      %s203 = sor.u32 %s201, %s202
      %p204 = scmp.eq.s32.totalorder %s203, 0
      %s206 = sadd.s32 %s205, 1
      %s207 = scalar_select %p204, %s205, %s206
      %p210 = pneg %p204
      %p211 = scmp.eq.s32.totalorder %s30, 3
      %p212 = por %p210, %p211
      %p213 = scmp.ne.s32.totalorder %s205, %s208
      %p214 = scmp.eq.s32.totalorder %s30, 0
      %p215 = por %p213, %p214
      %p216 = scmp.ne.s32.totalorder %s205, %s208
      %p217 = scmp.eq.s32.totalorder %s35, 3
      %p218 = por %p216, %p217
      %p219 = scmp.ne.s32.totalorder %s208, %s209
      %p220 = scmp.eq.s32.totalorder %s35, 0
      %p221 = por %p219, %p220
      %p222 = scmp.ne.s32.totalorder %s208, %s209
      %p223 = scmp.eq.s32.totalorder %s36, 3
      %p224 = por %p222, %p223
      %p226 = scmp.ne.s32.totalorder %s209, %s225
      %p227 = scmp.eq.s32.totalorder %s36, 0
      %p228 = por %p226, %p227
      %s229 = ssub.s32 %s37, %s49
      %p230 = scmp.eq.s32.totalorder %s229, 0
      %s232 = sadd.s32 %s231, 1
      %s233 = scalar_select %p230, %s231, %s232
      %p236 = pneg %p230
      %p237 = scmp.eq.s32.totalorder %s30, 3
      %p238 = por %p236, %p237
      %p239 = scmp.ne.s32.totalorder %s231, %s234
      %p240 = scmp.eq.s32.totalorder %s30, 0
      %p241 = por %p239, %p240
      %p242 = scmp.ne.s32.totalorder %s231, %s234
      %p243 = scmp.eq.s32.totalorder %s35, 3
      %p244 = por %p242, %p243
      %p245 = scmp.ne.s32.totalorder %s234, %s235
      %p246 = scmp.eq.s32.totalorder %s35, 0
      %p247 = por %p245, %p246
      %p248 = scmp.ne.s32.totalorder %s234, %s235
      %p249 = scmp.eq.s32.totalorder %s36, 3
      %p250 = por %p248, %p249
      %p252 = scmp.ne.s32.totalorder %s235, %s251
      %p253 = scmp.eq.s32.totalorder %s36, 0
      %p254 = por %p252, %p253
      %s255 = ssub.s32 %s37, %s49
      %p256 = scmp.eq.s32.totalorder %s255, 0
      %s258 = sadd.s32 %s257, 1
      %s259 = scalar_select %p256, %s257, %s258
      %p262 = pneg %p256
      %p263 = scmp.eq.s32.totalorder %s30, 3
      %p264 = por %p262, %p263
      %p265 = scmp.ne.s32.totalorder %s257, %s260
      %p266 = scmp.eq.s32.totalorder %s30, 0
      %p267 = por %p265, %p266
      %p268 = scmp.ne.s32.totalorder %s257, %s260
      %p269 = scmp.eq.s32.totalorder %s35, 3
      %p270 = por %p268, %p269
      %p271 = scmp.ne.s32.totalorder %s260, %s261
      %p272 = scmp.eq.s32.totalorder %s35, 0
      %p273 = por %p271, %p272
      %p274 = scmp.ne.s32.totalorder %s260, %s261
      %p275 = scmp.eq.s32.totalorder %s36, 3
      %p276 = por %p274, %p275
      %p278 = scmp.ne.s32.totalorder %s261, %s277
      %p279 = scmp.eq.s32.totalorder %s36, 0
      %p280 = por %p278, %p279
      %s281 = ssub.s32 %s37, %s49
      %p282 = scmp.eq.s32.totalorder %s281, 0
      %s284 = sadd.s32 %s283, 1
      %s285 = scalar_select %p282, %s283, %s284
      %p288 = pneg %p282
      %p289 = scmp.eq.s32.totalorder %s30, 3
      %p290 = por %p288, %p289
      %p291 = scmp.ne.s32.totalorder %s283, %s286
      %p292 = scmp.eq.s32.totalorder %s30, 0
      %p293 = por %p291, %p292
      %p294 = scmp.ne.s32.totalorder %s283, %s286
      %p295 = scmp.eq.s32.totalorder %s35, 3
      %p296 = por %p294, %p295
      %p297 = scmp.ne.s32.totalorder %s286, %s287
      %p298 = scmp.eq.s32.totalorder %s35, 0
      %p299 = por %p297, %p298
      %p300 = scmp.ne.s32.totalorder %s286, %s287
      %p301 = scmp.eq.s32.totalorder %s36, 3
      %p302 = por %p300, %p301
      %p304 = scmp.ne.s32.totalorder %s287, %s303
      %p305 = scmp.eq.s32.totalorder %s36, 0
      %p306 = por %p304, %p305
      %s308 = sadd.s32 %s307, 1
      %p311 = scmp.eq.s32.totalorder %s30, 3
      %p312 = scmp.ne.s32.totalorder %s307, %s309
      %p313 = scmp.eq.s32.totalorder %s30, 0
      %p314 = por %p312, %p313
      %p315 = scmp.ne.s32.totalorder %s307, %s309
      %p316 = scmp.eq.s32.totalorder %s35, 3
      %p317 = por %p315, %p316
      %p318 = scmp.ne.s32.totalorder %s309, %s310
      %p319 = scmp.eq.s32.totalorder %s35, 0
      %p320 = por %p318, %p319
      %p321 = scmp.ne.s32.totalorder %s309, %s310
      %p322 = scmp.eq.s32.totalorder %s36, 3
      %p323 = por %p321, %p322
      %p325 = scmp.ne.s32.totalorder %s310, %s324
      %p326 = scmp.eq.s32.totalorder %s36, 0
      %p327 = por %p325, %p326
      %s329 = sadd.s32 %s328, 1
      %p332 = scmp.eq.s32.totalorder %s30, 3
      %p333 = scmp.ne.s32.totalorder %s328, %s330
      %p334 = scmp.eq.s32.totalorder %s30, 0
      %p335 = por %p333, %p334
      %p336 = scmp.ne.s32.totalorder %s328, %s330
      %p337 = scmp.eq.s32.totalorder %s35, 3
      %p338 = por %p336, %p337
      %p339 = scmp.ne.s32.totalorder %s330, %s331
      %p340 = scmp.eq.s32.totalorder %s35, 0
      %p341 = por %p339, %p340
      %p342 = scmp.ne.s32.totalorder %s330, %s331
      %p343 = scmp.eq.s32.totalorder %s36, 3
      %p344 = por %p342, %p343
      %p346 = scmp.ne.s32.totalorder %s331, %s345
      %p347 = scmp.eq.s32.totalorder %s36, 0
      %p348 = por %p346, %p347
      %s349 = ssub.s32 %s37, %s49
      %p350 = scmp.eq.s32.totalorder %s349, 0
      %s352 = sadd.s32 %s351, 1
      %s353 = scalar_select %p350, %s351, %s352
      %p356 = pneg %p350
      %p357 = scmp.eq.s32.totalorder %s30, 3
      %p358 = por %p356, %p357
      %p359 = scmp.ne.s32.totalorder %s351, %s354
      %p360 = scmp.eq.s32.totalorder %s30, 0
      %p361 = por %p359, %p360
      %p362 = scmp.ne.s32.totalorder %s351, %s354
      %p363 = scmp.eq.s32.totalorder %s35, 3
      %p364 = por %p362, %p363
      %p365 = scmp.ne.s32.totalorder %s354, %s355
      %p366 = scmp.eq.s32.totalorder %s35, 0
      %p367 = por %p365, %p366
      %p368 = scmp.ne.s32.totalorder %s354, %s355
      %p369 = scmp.eq.s32.totalorder %s36, 3
      %p370 = por %p368, %p369
      %p372 = scmp.ne.s32.totalorder %s355, %s371
      %p373 = scmp.eq.s32.totalorder %s36, 0
      %p374 = por %p372, %p373
      %p375 = scmp.le.s32.totalorder 1, %s30
      %p376 = scmp.lt.s32.totalorder %s30, 5
      %p377 = pnand %p375, %p376
      %p378 = pneg %p377
      // Predicated region
      $region9: #{tpu_custom_call.1} parent=5 // pred_check
        _
      $region10: #{tpu_custom_call.1} parent=5 // pred_check_branch
        %380 = sbr.rel (%p377) target = $region12
      $region11: #{tpu_custom_call.1} parent=5 // pred_region
        %s381 = ssub.s32 %s30, 1
        // Predicated region
        $region13: #{tpu_custom_call.1} parent=11 // pred_check
          %p382 = pneg %p63
        $region14: #{tpu_custom_call.1} parent=11 // pred_check_branch
          %384 = sbr.rel (%p382) target = $region16
        $region15: #{tpu_custom_call.1} parent=11 // pred_region
          %s386 = ssub.s32 256, 256
          %387 = vsyncadd [#allocation6], %s386
          %s389 = sshll.u32 [#allocation5], 4
          %s390 = int_to_ptr.vmem [resolvable:$true] %s389
          %392 = dma.hbm_to_vmem [thread:$0]  %s0, 256, %s390, [#allocation6]
        $region16: #{tpu_custom_call.1} parent=11 // pred_fallthru
          _
        // Predicated region
        $region17: #{tpu_custom_call.1} parent=11 // pred_check
          %p393 = pneg %p320
        $region18: #{tpu_custom_call.1} parent=11 // pred_check_branch
          %395 = sbr.rel (%p393) target = $region20
        $region19: #{tpu_custom_call.1} parent=11 // pred_region
          _
        $region20: #{tpu_custom_call.1} parent=11 // pred_fallthru
          _
        // Predicated region
        $region21: #{tpu_custom_call.1} parent=11 // pred_check
          %p396 = pneg %p341
        $region22: #{tpu_custom_call.1} parent=11 // pred_check_branch
          %398 = sbr.rel (%p396) target = $region24
        $region23: #{tpu_custom_call.1} parent=11 // pred_region
          _
        $region24: #{tpu_custom_call.1} parent=11 // pred_fallthru
          _
      $region12: #{tpu_custom_call.1} parent=5 // pred_fallthru
        _
      %p399 = scmp.lt.s32.totalorder %s30, 4
      // Predicated region
      $region25: #{tpu_custom_call.1} parent=5 // pred_check
        %p400 = pneg %p399
      $region26: #{tpu_custom_call.1} parent=5 // pred_check_branch
        %402 = sbr.rel (%p400) target = $region28
      $region27: #{tpu_custom_call.1} parent=5 // pred_region
        // Predicated region
        $region29: #{tpu_custom_call.1} parent=27 // pred_check
          %p403 = pneg %p83
        $region30: #{tpu_custom_call.1} parent=27 // pred_check_branch
          %405 = sbr.rel (%p403) target = $region32
        $region31: #{tpu_custom_call.1} parent=27 // pred_region
          %s406 = sand.u32 %s30, 1
          %s407 = scalar_lea.sflag [#allocation9], %s406
          %s408 = sand.u32 %s73, 1
          %s409 = smul.addr %s408, 8
          %s410 = scalar_lea.vmem [#allocation8], %s409
          %s412 = ssub.s32 128, 128
          %413 = vsyncadd %s407, %s412
          %s414 = smul.addr %s37, 128
          %s415 = scalar_lea.hbm %s1, %s414
          %s417 = sshll.u32 %s410, 4
          %s418 = int_to_ptr.vmem [resolvable:$true] %s417
          %420 = dma.hbm_to_vmem [thread:$0]  %s415, 128, %s418, %s407
        $region32: #{tpu_custom_call.1} parent=27 // pred_fallthru
          _
        // Predicated region
        $region33: #{tpu_custom_call.1} parent=27 // pred_check
          %p421 = pneg %p109
        $region34: #{tpu_custom_call.1} parent=27 // pred_check_branch
          %423 = sbr.rel (%p421) target = $region36
        $region35: #{tpu_custom_call.1} parent=27 // pred_region
          %s424 = sand.u32 %s30, 1
          %s425 = scalar_lea.sflag [#allocation9], %s424
          %s426 = sand.u32 %s99, 1
          %s427 = smul.addr %s426, 256
          %s428 = scalar_lea.vmem [#allocation10], %s427
          %s429 = smul.u32 2, %s38
          %s431 = ssub.s32 4096, 4096
          %432 = vsyncadd %s425, %s431
          %s433 = smul.addr %s429, 64
          %s434 = scalar_lea.hbm %s2, %s433
          %s435 = sshll.u32 %s428, 4
          %s436 = int_to_ptr.vmem [resolvable:$true] %s435
          %441 = dma.hbm_to_vmem [thread:$0]  %s434, 4096, %s436, %s425, 256, 128, 8
        $region36: #{tpu_custom_call.1} parent=27 // pred_fallthru
          _
        // Predicated region
        $region37: #{tpu_custom_call.1} parent=27 // pred_check
          %p442 = pneg %p135
        $region38: #{tpu_custom_call.1} parent=27 // pred_check_branch
          %444 = sbr.rel (%p442) target = $region40
        $region39: #{tpu_custom_call.1} parent=27 // pred_region
          %s445 = smul.u32 2, %s38
          %p446 = scmp.lt.s32.totalorder %s445, 3
          %s447 = scalar_select %p446, %s445, 3
          %s448 = scalar_lea.vmem %s3, %s447
          %s449 = smul.u32 2, %s38
        $region40: #{tpu_custom_call.1} parent=27 // pred_fallthru
          _
        // Predicated region
        $region41: #{tpu_custom_call.1} parent=27 // pred_check
          %p450 = pneg %p161
        $region42: #{tpu_custom_call.1} parent=27 // pred_check_branch
          %452 = sbr.rel (%p450) target = $region44
        $region43: #{tpu_custom_call.1} parent=27 // pred_region
          %s453 = smul.u32 2, %s38
          %p454 = scmp.lt.s32.totalorder %s453, 3
          %s455 = scalar_select %p454, %s453, 3
          %s456 = scalar_lea.vmem %s4, %s455
          %s457 = smul.u32 2, %s38
        $region44: #{tpu_custom_call.1} parent=27 // pred_fallthru
          _
        // Predicated region
        $region45: #{tpu_custom_call.1} parent=27 // pred_check
          %p458 = pneg %p187
        $region46: #{tpu_custom_call.1} parent=27 // pred_check_branch
          %460 = sbr.rel (%p458) target = $region48
        $region47: #{tpu_custom_call.1} parent=27 // pred_region
          %s461 = smul.u32 2, %s38
          %p462 = scmp.lt.s32.totalorder %s461, 3
          %s463 = scalar_select %p462, %s461, 3
          %s464 = scalar_lea.vmem %s5, %s463
          %s465 = smul.u32 2, %s38
        $region48: #{tpu_custom_call.1} parent=27 // pred_fallthru
          _
        // Predicated region
        $region49: #{tpu_custom_call.1} parent=27 // pred_check
          %p466 = pneg %p215
        $region50: #{tpu_custom_call.1} parent=27 // pred_check_branch
          %468 = sbr.rel (%p466) target = $region52
        $region51: #{tpu_custom_call.1} parent=27 // pred_region
          %s469 = sand.u32 %s205, 1
          %s470 = scalar_lea.sflag [#allocation12], %s469
          %s471 = sand.u32 %s205, 1
          %s472 = smul.addr %s471, 128
          %s473 = scalar_lea.vmem [#allocation11], %s472
          %s474 = smul.u32 32, %s38
          %s476 = ssub.s32 2048, 2048
          %477 = vsyncadd %s470, %s476
          %s478 = smul.addr %s474, 2
          %s479 = sadd.s32 %s37, %s478
          %s480 = smul.addr %s479, 64
          %s481 = scalar_lea.hbm %s6, %s480
          %s482 = sshll.u32 %s473, 4
          %s483 = int_to_ptr.vmem [resolvable:$true] %s482
          %488 = dma.hbm_to_vmem [thread:$0]  %s481, 2048, %s483, %s470, 128, 64, 4
        $region52: #{tpu_custom_call.1} parent=27 // pred_fallthru
          _
        // Predicated region
        $region53: #{tpu_custom_call.1} parent=27 // pred_check
          %p489 = pneg %p241
        $region54: #{tpu_custom_call.1} parent=27 // pred_check_branch
          %491 = sbr.rel (%p489) target = $region56
        $region55: #{tpu_custom_call.1} parent=27 // pred_region
          %p492 = scmp.lt.s32.totalorder %s37, 1
          %s493 = scalar_select %p492, %s37, 1
          %s494 = scalar_lea.vmem %s7, %s493
        $region56: #{tpu_custom_call.1} parent=27 // pred_fallthru
          _
        // Predicated region
        $region57: #{tpu_custom_call.1} parent=27 // pred_check
          %p495 = pneg %p267
        $region58: #{tpu_custom_call.1} parent=27 // pred_check_branch
          %497 = sbr.rel (%p495) target = $region60
        $region59: #{tpu_custom_call.1} parent=27 // pred_region
          %p498 = scmp.lt.s32.totalorder %s37, 1
          %s499 = scalar_select %p498, %s37, 1
          %s500 = scalar_lea.vmem %s8, %s499
        $region60: #{tpu_custom_call.1} parent=27 // pred_fallthru
          _
        // Predicated region
        $region61: #{tpu_custom_call.1} parent=27 // pred_check
          %p501 = pneg %p293
        $region62: #{tpu_custom_call.1} parent=27 // pred_check_branch
          %503 = sbr.rel (%p501) target = $region64
        $region63: #{tpu_custom_call.1} parent=27 // pred_region
          %p504 = scmp.lt.s32.totalorder %s37, 1
          %s505 = scalar_select %p504, %s37, 1
          %s506 = scalar_lea.vmem %s9, %s505
        $region64: #{tpu_custom_call.1} parent=27 // pred_fallthru
          _
      $region28: #{tpu_custom_call.1} parent=5 // pred_fallthru
        _
      %p507 = scmp.le.s32.totalorder 1, %s30
      %p508 = scmp.lt.s32.totalorder %s30, 5
      %p509 = pnand %p507, %p508
      %p510 = pneg %p509
      // Predicated region
      $region65: #{tpu_custom_call.1} parent=5 // pred_check
        _
      $region66: #{tpu_custom_call.1} parent=5 // pred_check_branch
        %512 = sbr.rel (%p509) target = $region68
      $region67: #{tpu_custom_call.1} parent=5 // pred_region
        %s513 = ssub.s32 %s30, 1
        // Predicated region
        $region69: #{tpu_custom_call.1} parent=67 // pred_check
          %p514 = pneg %p63
        $region70: #{tpu_custom_call.1} parent=67 // pred_check_branch
          %516 = sbr.rel (%p514) target = $region72
        $region71: #{tpu_custom_call.1} parent=67 // pred_region
          %517 = dma.done [#allocation6], 256
        $region72: #{tpu_custom_call.1} parent=67 // pred_fallthru
          _
        %s518 = sand.u32 %s35, 1
        %s519 = scalar_lea.sflag [#allocation9], %s518
        %s520 = sand.u32 %s76, 1
        %s521 = smul.addr %s520, 8
        %s522 = scalar_lea.vmem [#allocation8], %s521
        // Predicated region
        $region73: #{tpu_custom_call.1} parent=67 // pred_check
          %p523 = pneg %p89
        $region74: #{tpu_custom_call.1} parent=67 // pred_check_branch
          %525 = sbr.rel (%p523) target = $region76
        $region75: #{tpu_custom_call.1} parent=67 // pred_region
          %526 = dma.done %s519, 128
        $region76: #{tpu_custom_call.1} parent=67 // pred_fallthru
          _
        %s527 = sand.u32 %s35, 1
        %s528 = scalar_lea.sflag [#allocation9], %s527
        %s529 = sand.u32 %s102, 1
        %s530 = smul.addr %s529, 256
        %s531 = scalar_lea.vmem [#allocation10], %s530
        // Predicated region
        $region77: #{tpu_custom_call.1} parent=67 // pred_check
          %p532 = pneg %p115
        $region78: #{tpu_custom_call.1} parent=67 // pred_check_branch
          %534 = sbr.rel (%p532) target = $region80
        $region79: #{tpu_custom_call.1} parent=67 // pred_region
          %535 = dma.done %s528, 4096
        $region80: #{tpu_custom_call.1} parent=67 // pred_fallthru
          _
        %s536 = sand.u32 %s208, 1
        %s537 = scalar_lea.sflag [#allocation12], %s536
        %s538 = sand.u32 %s208, 1
        %s539 = smul.addr %s538, 128
        %s540 = scalar_lea.vmem [#allocation11], %s539
        // Predicated region
        $region81: #{tpu_custom_call.1} parent=67 // pred_check
          %p541 = pneg %p221
        $region82: #{tpu_custom_call.1} parent=67 // pred_check_branch
          %543 = sbr.rel (%p541) target = $region84
        $region83: #{tpu_custom_call.1} parent=67 // pred_region
          %544 = dma.done %s537, 2048
        $region84: #{tpu_custom_call.1} parent=67 // pred_fallthru
          _
        %p545 = pneg %p63
        %p546 = pneg %p60
        %s547 = sand.u32 %s35, 1
        %s548 = scalar_lea.sflag [#allocation9], %s547
        %s549 = sand.u32 %s76, 1
        %s550 = smul.addr %s549, 8
        %s551 = scalar_lea.vmem [#allocation8], %s550
        %p552 = pneg %p89
        %p553 = pneg %p86
        %s554 = sand.u32 %s35, 1
        %s555 = scalar_lea.sflag [#allocation9], %s554
        %s556 = sand.u32 %s102, 1
        %s557 = smul.addr %s556, 256
        %s558 = scalar_lea.vmem [#allocation10], %s557
        %p559 = pneg %p115
        %p560 = pneg %p112
        %s561 = smul.u32 2, %s40
        %p562 = scmp.lt.s32.totalorder %s561, 3
        %s563 = scalar_select %p562, %s561, 3
        %s564 = scalar_lea.vmem %s3, %s563
        %p565 = pneg %p141
        %p566 = pneg %p138
        %s567 = smul.u32 2, %s40
        %p568 = scmp.lt.s32.totalorder %s567, 3
        %s569 = scalar_select %p568, %s567, 3
        %s570 = scalar_lea.vmem %s4, %s569
        %p571 = pneg %p167
        %p572 = pneg %p164
        %s573 = smul.u32 2, %s40
        %p574 = scmp.lt.s32.totalorder %s573, 3
        %s575 = scalar_select %p574, %s573, 3
        %s576 = scalar_lea.vmem %s5, %s575
        %p577 = pneg %p193
        %p578 = pneg %p190
        %s579 = sand.u32 %s208, 1
        %s580 = scalar_lea.sflag [#allocation12], %s579
        %s581 = sand.u32 %s208, 1
        %s582 = smul.addr %s581, 128
        %s583 = scalar_lea.vmem [#allocation11], %s582
        %p584 = pneg %p221
        %p585 = pneg %p218
        %p586 = scmp.lt.s32.totalorder %s39, 1
        %s587 = scalar_select %p586, %s39, 1
        %s588 = scalar_lea.vmem %s7, %s587
        %p589 = pneg %p247
        %p590 = pneg %p244
        %p591 = scmp.lt.s32.totalorder %s39, 1
        %s592 = scalar_select %p591, %s39, 1
        %s593 = scalar_lea.vmem %s8, %s592
        %p594 = pneg %p273
        %p595 = pneg %p270
        %p596 = scmp.lt.s32.totalorder %s39, 1
        %s597 = scalar_select %p596, %s39, 1
        %s598 = scalar_lea.vmem %s9, %s597
        %p599 = pneg %p299
        %p600 = pneg %p296
        %p601 = pneg %p320
        %p602 = pneg %p317
        %p603 = pneg %p341
        %p604 = pneg %p338
        %p605 = pneg %p367
        %p606 = pneg %p364
        %s607 = sand.u32 %s354, 1
        %s608 = scalar_lea.sflag [#allocation7], %s607
        %s609 = sand.u32 %s354, 1
        %s610 = smul.addr %s609, 8
        %s611 = scalar_lea.vmem [#allocation13], %s610
        %s612 = smul.u32 2, %s40
        %s613 = smul.u32 2, %s40
        %p614 = scmp.lt.s32.totalorder %s613, 3
        %s615 = scalar_select %p614, %s613, 3
        %s616 = scalar_lea.vmem %s3, %s615
        %s617 = smul.u32 2, %s40
        %s618 = smul.u32 2, %s40
        %p619 = scmp.lt.s32.totalorder %s618, 3
        %s620 = scalar_select %p619, %s618, 3
        %s621 = scalar_lea.vmem %s4, %s620
        %s622 = smul.u32 2, %s40
        %s623 = smul.u32 2, %s40
        %p624 = scmp.lt.s32.totalorder %s623, 3
        %s625 = scalar_select %p624, %s623, 3
        %s626 = scalar_lea.vmem %s5, %s625
        %s627 = smul.u32 2, %s40
        %s628 = smul.u32 32, %s40
        %p629 = scmp.lt.s32.totalorder %s39, 1
        %s630 = scalar_select %p629, %s39, 1
        %s631 = scalar_lea.vmem %s7, %s630
        %p632 = scmp.lt.s32.totalorder %s39, 1
        %s633 = scalar_select %p632, %s39, 1
        %s634 = scalar_lea.vmem %s8, %s633
        %p635 = scmp.lt.s32.totalorder %s39, 1
        %s636 = scalar_select %p635, %s39, 1
        %s637 = scalar_lea.vmem %s9, %s636
        %p639 = scmp.eq.s32.totalorder %s40, 0
        // Predicated region
        $region85: #{tpu_custom_call.1} parent=67 // pred_check
          %p640 = pneg %p639
        $region86: #{tpu_custom_call.1} parent=67 // pred_check_branch
          %642 = sbr.rel (%p640) target = $region88
        $region87: #{tpu_custom_call.1} parent=67 // pred_region
          %643 = vst [vmem:[#allocation2] sm:$0xff] 0.0
        $region88: #{tpu_custom_call.1} parent=67 // pred_fallthru
          _
        %v644 = vld [vmem:[#allocation5] sm:$0xff]
        %v645 = vld [vmem:[#allocation5 + $0x8] sm:$0xff]
        %v646 = vpack.c.bf16 %v644, %v644
        %v647 = vpack.c.bf16 %v645, %v645
        %v648 = vld [vmem:[%s531] sm:$0xff]
        %v649 = vld [vmem:[%s531 + $0x8] sm:$0xff]
        %v650 = vld [vmem:[%s531 + $0x10] sm:$0xff]
        %v651 = vld [vmem:[%s531 + $0x18] sm:$0xff]
        %v652 = vld [vmem:[%s531 + $0x20] sm:$0xff]
        %v653 = vld [vmem:[%s531 + $0x28] sm:$0xff]
        %v654 = vld [vmem:[%s531 + $0x30] sm:$0xff]
        %v655 = vld [vmem:[%s531 + $0x38] sm:$0xff]
        %v656 = vld [vmem:[%s531 + $0x40] sm:$0xff]
        %v657 = vld [vmem:[%s531 + $0x48] sm:$0xff]
        %v658 = vld [vmem:[%s531 + $0x50] sm:$0xff]
        %v659 = vld [vmem:[%s531 + $0x58] sm:$0xff]
        %v660 = vld [vmem:[%s531 + $0x60] sm:$0xff]
        %v661 = vld [vmem:[%s531 + $0x68] sm:$0xff]
        %v662 = vld [vmem:[%s531 + $0x70] sm:$0xff]
        %v663 = vld [vmem:[%s531 + $0x78] sm:$0xff]
        %v664 = vld [vmem:[%s531 + $0x80] sm:$0xff]
        %v665 = vld [vmem:[%s531 + $0x88] sm:$0xff]
        %v666 = vld [vmem:[%s531 + $0x90] sm:$0xff]
        %v667 = vld [vmem:[%s531 + $0x98] sm:$0xff]
        %v668 = vld [vmem:[%s531 + $0xa0] sm:$0xff]
        %v669 = vld [vmem:[%s531 + $0xa8] sm:$0xff]
        %v670 = vld [vmem:[%s531 + $0xb0] sm:$0xff]
        %v671 = vld [vmem:[%s531 + $0xb8] sm:$0xff]
        %v672 = vld [vmem:[%s531 + $0xc0] sm:$0xff]
        %v673 = vld [vmem:[%s531 + $0xc8] sm:$0xff]
        %v674 = vld [vmem:[%s531 + $0xd0] sm:$0xff]
        %v675 = vld [vmem:[%s531 + $0xd8] sm:$0xff]
        %v676 = vld [vmem:[%s531 + $0xe0] sm:$0xff]
        %v677 = vld [vmem:[%s531 + $0xe8] sm:$0xff]
        %v678 = vld [vmem:[%s531 + $0xf0] sm:$0xff]
        %v679 = vld [vmem:[%s531 + $0xf8] sm:$0xff]
        %v680 = vld [vmem:[%s616] sm:$0x3]
        %v682 = vlaneseq
        %v683 = vshrl.u32 %v682, 7
        %v684 = vsub.s32 0, %v683
        %v685 = vrot.slane %v680, %v684
        %v686 = vlaneseq
        %v687 = vshrl.u32 %v686, 7
        %v688 = vsub.s32 1, %v687
        %v689 = vrot.slane %v680, %v688
        %v724 = vunpack.c.l.b16 %v648
        %v725 = vunpack.c.h.b16 %v648
        %v726 = vunpack.c.l.b16 %v649
        %v727 = vunpack.c.h.b16 %v649
        %v728 = vunpack.c.l.b16 %v650
        %v729 = vunpack.c.h.b16 %v650
        %v730 = vunpack.c.l.b16 %v651
        %v731 = vunpack.c.h.b16 %v651
        %v732 = vunpack.c.l.b16 %v652
        %v733 = vunpack.c.h.b16 %v652
        %v734 = vunpack.c.l.b16 %v653
        %v735 = vunpack.c.h.b16 %v653
        %v736 = vunpack.c.l.b16 %v654
        %v737 = vunpack.c.h.b16 %v654
        %v738 = vunpack.c.l.b16 %v655
        %v739 = vunpack.c.h.b16 %v655
        %v740 = vunpack.c.l.b16 %v656
        %v741 = vunpack.c.h.b16 %v656
        %v742 = vunpack.c.l.b16 %v657
        %v743 = vunpack.c.h.b16 %v657
        %v744 = vunpack.c.l.b16 %v658
        %v745 = vunpack.c.h.b16 %v658
        %v746 = vunpack.c.l.b16 %v659
        %v747 = vunpack.c.h.b16 %v659
        %v748 = vunpack.c.l.b16 %v660
        %v749 = vunpack.c.h.b16 %v660
        %v750 = vunpack.c.l.b16 %v661
        %v751 = vunpack.c.h.b16 %v661
        %v752 = vunpack.c.l.b16 %v662
        %v753 = vunpack.c.h.b16 %v662
        %v754 = vunpack.c.l.b16 %v663
        %v755 = vunpack.c.h.b16 %v663
        %v756 = vunpack.c.l.b16 %v664
        %v757 = vunpack.c.h.b16 %v664
        %v758 = vunpack.c.l.b16 %v665
        %v759 = vunpack.c.h.b16 %v665
        %v760 = vunpack.c.l.b16 %v666
        %v761 = vunpack.c.h.b16 %v666
        %v762 = vunpack.c.l.b16 %v667
        %v763 = vunpack.c.h.b16 %v667
        %v764 = vunpack.c.l.b16 %v668
        %v765 = vunpack.c.h.b16 %v668
        %v766 = vunpack.c.l.b16 %v669
        %v767 = vunpack.c.h.b16 %v669
        %v768 = vunpack.c.l.b16 %v670
        %v769 = vunpack.c.h.b16 %v670
        %v770 = vunpack.c.l.b16 %v671
        %v771 = vunpack.c.h.b16 %v671
        %v772 = vunpack.c.l.b16 %v672
        %v773 = vunpack.c.h.b16 %v672
        %v774 = vunpack.c.l.b16 %v673
        %v775 = vunpack.c.h.b16 %v673
        %v776 = vunpack.c.l.b16 %v674
        %v777 = vunpack.c.h.b16 %v674
        %v778 = vunpack.c.l.b16 %v675
        %v779 = vunpack.c.h.b16 %v675
        %v780 = vunpack.c.l.b16 %v676
        %v781 = vunpack.c.h.b16 %v676
        %v782 = vunpack.c.l.b16 %v677
        %v783 = vunpack.c.h.b16 %v677
        %v784 = vunpack.c.l.b16 %v678
        %v785 = vunpack.c.h.b16 %v678
        %v786 = vunpack.c.l.b16 %v679
        %v787 = vunpack.c.h.b16 %v679
        %v788 = vpack.c.b16 %v726, %v724
        %v789 = vpack.c.b16 %v727, %v725
        %v790 = vpack.c.b16 %v730, %v728
        %v791 = vpack.c.b16 %v731, %v729
        %v792 = vpack.c.b16 %v734, %v732
        %v793 = vpack.c.b16 %v735, %v733
        %v794 = vpack.c.b16 %v738, %v736
        %v795 = vpack.c.b16 %v739, %v737
        %v796 = vpack.c.b16 %v742, %v740
        %v797 = vpack.c.b16 %v743, %v741
        %v798 = vpack.c.b16 %v746, %v744
        %v799 = vpack.c.b16 %v747, %v745
        %v800 = vpack.c.b16 %v750, %v748
        %v801 = vpack.c.b16 %v751, %v749
        %v802 = vpack.c.b16 %v754, %v752
        %v803 = vpack.c.b16 %v755, %v753
        %v804 = vpack.c.b16 %v758, %v756
        %v805 = vpack.c.b16 %v759, %v757
        %v806 = vpack.c.b16 %v762, %v760
        %v807 = vpack.c.b16 %v763, %v761
        %v808 = vpack.c.b16 %v766, %v764
        %v809 = vpack.c.b16 %v767, %v765
        %v810 = vpack.c.b16 %v770, %v768
        %v811 = vpack.c.b16 %v771, %v769
        %v812 = vpack.c.b16 %v774, %v772
        %v813 = vpack.c.b16 %v775, %v773
        %v814 = vpack.c.b16 %v778, %v776
        %v815 = vpack.c.b16 %v779, %v777
        %v816 = vpack.c.b16 %v782, %v780
        %v817 = vpack.c.b16 %v783, %v781
        %v818 = vpack.c.b16 %v786, %v784
        %v819 = vpack.c.b16 %v787, %v785
        %852 = vmatprep.subr.bf16.mxu0 %v789
        %853 = vmatpush1.bf16.msra.mxu0 %v788
        %854 = vmatprep.subr.bf16.mxu0 %v791
        %855 = vmatpush1.bf16.msra.mxu0 %v790
        %856 = vmatprep.subr.bf16.mxu0 %v793
        %857 = vmatpush1.bf16.msra.mxu0 %v792
        %858 = vmatprep.subr.bf16.mxu0 %v795
        %859 = vmatpush1.bf16.msra.mxu0 %v794
        %860 = vmatprep.subr.bf16.mxu0 %v797
        %861 = vmatpush1.bf16.msra.mxu0 %v796
        %862 = vmatprep.subr.bf16.mxu0 %v799
        %863 = vmatpush1.bf16.msra.mxu0 %v798
        %864 = vmatprep.subr.bf16.mxu0 %v801
        %865 = vmatpush1.bf16.msra.mxu0 %v800
        %866 = vmatprep.subr.bf16.mxu0 %v803
        %867 = vmatpush1.bf16.msra.mxu0 %v802
        %868 = vmatprep.subr.bf16.mxu0 %v805
        %869 = vmatpush1.bf16.msra.mxu0 %v804
        %870 = vmatprep.subr.bf16.mxu0 %v807
        %871 = vmatpush1.bf16.msra.mxu0 %v806
        %872 = vmatprep.subr.bf16.mxu0 %v809
        %873 = vmatpush1.bf16.msra.mxu0 %v808
        %874 = vmatprep.subr.bf16.mxu0 %v811
        %875 = vmatpush1.bf16.msra.mxu0 %v810
        %876 = vmatprep.subr.bf16.mxu0 %v813
        %877 = vmatpush1.bf16.msra.mxu0 %v812
        %878 = vmatprep.subr.bf16.mxu0 %v815
        %879 = vmatpush1.bf16.msra.mxu0 %v814
        %880 = vmatprep.subr.bf16.mxu0 %v817
        %881 = vmatpush1.bf16.msra.mxu0 %v816
        %882 = vmatprep.subr.bf16.mxu0 %v819
        %883 = vmatpush1.bf16.msra.mxu0 %v818
        %884 = vmatprep.mubr.bf16.mxu0 %v647
        %885 = vmatmul.mubr.bf16.gmra.mrb[0].mxu0 %v646
        %v886 = vpop.f32.mrb[0].mxu0
        %v887 = vadd.f32 %v685, %v886
        %v888 = vpop.f32.mrb[0].mxu0
        %v889 = vadd.f32 %v689, %v888
        %v890 = vpop.f32.mrb[0].mxu0
        %v891 = vpop.f32.mrb[0].mxu0
        %892 = vdwg.mxu0
        %v893 = vrot.slane %v887, 4
        %v894 = vadd.f32 %v887, %v893
        %v895 = vrot.slane %v894, 2
        %v896 = vadd.f32 %v894, %v895
        %v897 = vrot.slane %v896, 1
        %v898 = vadd.f32 %v896, %v897
        %v899 = vrot.slane %v889, 4
        %v900 = vadd.f32 %v889, %v899
        %v901 = vrot.slane %v900, 2
        %v902 = vadd.f32 %v900, %v901
        %v903 = vrot.slane %v902, 1
        %v904 = vadd.f32 %v902, %v903
        %v905 = vmul.f32 %v898, 0.125
        %v906 = vmul.f32 %v904, 0.125
        %v907 = vsub.f32 %v887, %v905
        %v908 = vsub.f32 %v889, %v906
        %v909 = vmul.f32 %v907, %v907
        %v910 = vmul.f32 %v908, %v908
        %v911 = vrot.slane %v909, 4
        %v912 = vadd.f32 %v909, %v911
        %v913 = vrot.slane %v912, 2
        %v914 = vadd.f32 %v912, %v913
        %v915 = vrot.slane %v914, 1
        %v916 = vadd.f32 %v914, %v915
        %v917 = vrot.slane %v910, 4
        %v918 = vadd.f32 %v910, %v917
        %v919 = vrot.slane %v918, 2
        %v920 = vadd.f32 %v918, %v919
        %v921 = vrot.slane %v920, 1
        %v922 = vadd.f32 %v920, %v921
        %v923 = vmul.f32 %v916, 0.125
        %v924 = vmul.f32 %v922, 0.125
        %v925 = vadd.f32 %v923, 1e-05
        %v926 = vadd.f32 %v924, 1e-05
        %v927 = vrsqrt.pop %v925
        %v928 = vrsqrt.pop %v926
        %v929 = vld [vmem:[%s621] sm:$0x3]
        %v931 = vlaneseq
        %v932 = vshrl.u32 %v931, 7
        %v933 = vsub.s32 0, %v932
        %v934 = vrot.slane %v929, %v933
        %v935 = vlaneseq
        %v936 = vshrl.u32 %v935, 7
        %v937 = vsub.s32 1, %v936
        %v938 = vrot.slane %v929, %v937
        %v941 = vmul.f32 %v927, %v934
        %v942 = vmul.f32 %v928, %v938
        %v943 = vlaneseq
        %v944 = vshrl.u32 %v943, 7
        %v945 = vsub.s32 0, %v944
        %v946 = vrot.slane %v941, %v945
        %v947 = vlaneseq
        %v948 = vshrl.u32 %v947, 7
        %v949 = vsub.s32 0, %v948
        %v950 = vrot.slane %v942, %v949
        %v951 = vmul.f32 %v907, %v946
        %v952 = vmul.f32 %v908, %v950
        %v953 = vld [vmem:[%s626] sm:$0x3]
        %v955 = vlaneseq
        %v956 = vshrl.u32 %v955, 7
        %v957 = vsub.s32 0, %v956
        %v958 = vrot.slane %v953, %v957
        %v959 = vlaneseq
        %v960 = vshrl.u32 %v959, 7
        %v961 = vsub.s32 1, %v960
        %v962 = vrot.slane %v953, %v961
        %v965 = vadd.f32 %v951, %v958
        %v966 = vadd.f32 %v952, %v962
        %s967 = sld [smem:[#allocation3]]
        %vm968 = vcmp.gt.f32.partialorder %v965, 0.0
        %vm969 = vcmp.gt.f32.partialorder %v966, 0.0
        %v970 = vstv %s967
        %v971 = vmul.f32 %v970, %v965
        %v972 = vmul.f32 %v970, %v966
        %v973 = vsel %vm968, %v965, %v971
        %v974 = vsel %vm969, %v966, %v972
        %v975 = vld [vmem:[#allocation2] sm:$0xff]
        %v976 = vpack.c.bf16 %v973, %v973
        %v977 = vpack.c.bf16 %v974, %v974
        %v978 = vld [vmem:[%s540] sm:$0xf]
        %v979 = vld [vmem:[%s540 + $0x4] sm:$0xf]
        %v980 = vld [vmem:[%s540 + $0x8] sm:$0xf]
        %v981 = vld [vmem:[%s540 + $0xc] sm:$0xf]
        %v982 = vld [vmem:[%s540 + $0x10] sm:$0xf]
        %v983 = vld [vmem:[%s540 + $0x14] sm:$0xf]
        %v984 = vld [vmem:[%s540 + $0x18] sm:$0xf]
        %v985 = vld [vmem:[%s540 + $0x1c] sm:$0xf]
        %v986 = vld [vmem:[%s540 + $0x20] sm:$0xf]
        %v987 = vld [vmem:[%s540 + $0x24] sm:$0xf]
        %v988 = vld [vmem:[%s540 + $0x28] sm:$0xf]
        %v989 = vld [vmem:[%s540 + $0x2c] sm:$0xf]
        %v990 = vld [vmem:[%s540 + $0x30] sm:$0xf]
        %v991 = vld [vmem:[%s540 + $0x34] sm:$0xf]
        %v992 = vld [vmem:[%s540 + $0x38] sm:$0xf]
        %v993 = vld [vmem:[%s540 + $0x3c] sm:$0xf]
        %v994 = vld [vmem:[%s540 + $0x40] sm:$0xf]
        %v995 = vld [vmem:[%s540 + $0x44] sm:$0xf]
        %v996 = vld [vmem:[%s540 + $0x48] sm:$0xf]
        %v997 = vld [vmem:[%s540 + $0x4c] sm:$0xf]
        %v998 = vld [vmem:[%s540 + $0x50] sm:$0xf]
        %v999 = vld [vmem:[%s540 + $0x54] sm:$0xf]
        %v1000 = vld [vmem:[%s540 + $0x58] sm:$0xf]
        %v1001 = vld [vmem:[%s540 + $0x5c] sm:$0xf]
        %v1002 = vld [vmem:[%s540 + $0x60] sm:$0xf]
        %v1003 = vld [vmem:[%s540 + $0x64] sm:$0xf]
        %v1004 = vld [vmem:[%s540 + $0x68] sm:$0xf]
        %v1005 = vld [vmem:[%s540 + $0x6c] sm:$0xf]
        %v1006 = vld [vmem:[%s540 + $0x70] sm:$0xf]
        %v1007 = vld [vmem:[%s540 + $0x74] sm:$0xf]
        %v1008 = vld [vmem:[%s540 + $0x78] sm:$0xf]
        %v1009 = vld [vmem:[%s540 + $0x7c] sm:$0xf]
        %v1042 = vunpack.c.l.b16 %v978
        %v1043 = vunpack.c.l.b16 %v979
        %v1044 = vunpack.c.l.b16 %v980
        %v1045 = vunpack.c.l.b16 %v981
        %v1046 = vunpack.c.l.b16 %v982
        %v1047 = vunpack.c.l.b16 %v983
        %v1048 = vunpack.c.l.b16 %v984
        %v1049 = vunpack.c.l.b16 %v985
        %v1050 = vunpack.c.l.b16 %v986
        %v1051 = vunpack.c.l.b16 %v987
        %v1052 = vunpack.c.l.b16 %v988
        %v1053 = vunpack.c.l.b16 %v989
        %v1054 = vunpack.c.l.b16 %v990
        %v1055 = vunpack.c.l.b16 %v991
        %v1056 = vunpack.c.l.b16 %v992
        %v1057 = vunpack.c.l.b16 %v993
        %v1058 = vunpack.c.l.b16 %v994
        %v1059 = vunpack.c.l.b16 %v995
        %v1060 = vunpack.c.l.b16 %v996
        %v1061 = vunpack.c.l.b16 %v997
        %v1062 = vunpack.c.l.b16 %v998
        %v1063 = vunpack.c.l.b16 %v999
        %v1064 = vunpack.c.l.b16 %v1000
        %v1065 = vunpack.c.l.b16 %v1001
        %v1066 = vunpack.c.l.b16 %v1002
        %v1067 = vunpack.c.l.b16 %v1003
        %v1068 = vunpack.c.l.b16 %v1004
        %v1069 = vunpack.c.l.b16 %v1005
        %v1070 = vunpack.c.l.b16 %v1006
        %v1071 = vunpack.c.l.b16 %v1007
        %v1072 = vunpack.c.l.b16 %v1008
        %v1073 = vunpack.c.l.b16 %v1009
        %v1074 = vpack.c.b16 %v1043, %v1042
        %v1075 = vpack.c.b16 %v1045, %v1044
        %v1076 = vpack.c.b16 %v1047, %v1046
        %v1077 = vpack.c.b16 %v1049, %v1048
        %v1078 = vpack.c.b16 %v1051, %v1050
        %v1079 = vpack.c.b16 %v1053, %v1052
        %v1080 = vpack.c.b16 %v1055, %v1054
        %v1081 = vpack.c.b16 %v1057, %v1056
        %v1082 = vpack.c.b16 %v1059, %v1058
        %v1083 = vpack.c.b16 %v1061, %v1060
        %v1084 = vpack.c.b16 %v1063, %v1062
        %v1085 = vpack.c.b16 %v1065, %v1064
        %v1086 = vpack.c.b16 %v1067, %v1066
        %v1087 = vpack.c.b16 %v1069, %v1068
        %v1088 = vpack.c.b16 %v1071, %v1070
        %v1089 = vpack.c.b16 %v1073, %v1072
        %1106 = vmatprep.subr.bf16.mxu0 0
        %1107 = vmatpush1.bf16.msra.mxu0 %v1074
        %1108 = vmatprep.subr.bf16.mxu0 0
        %1109 = vmatpush1.bf16.msra.mxu0 %v1075
        %1110 = vmatprep.subr.bf16.mxu0 0
        %1111 = vmatpush1.bf16.msra.mxu0 %v1076
        %1112 = vmatprep.subr.bf16.mxu0 0
        %1113 = vmatpush1.bf16.msra.mxu0 %v1077
        %1114 = vmatprep.subr.bf16.mxu0 0
        %1115 = vmatpush1.bf16.msra.mxu0 %v1078
        %1116 = vmatprep.subr.bf16.mxu0 0
        %1117 = vmatpush1.bf16.msra.mxu0 %v1079
        %1118 = vmatprep.subr.bf16.mxu0 0
        %1119 = vmatpush1.bf16.msra.mxu0 %v1080
        %1120 = vmatprep.subr.bf16.mxu0 0
        %1121 = vmatpush1.bf16.msra.mxu0 %v1081
        %1122 = vmatprep.subr.bf16.mxu0 0
        %1123 = vmatpush1.bf16.msra.mxu0 %v1082
        %1124 = vmatprep.subr.bf16.mxu0 0
        %1125 = vmatpush1.bf16.msra.mxu0 %v1083
        %1126 = vmatprep.subr.bf16.mxu0 0
        %1127 = vmatpush1.bf16.msra.mxu0 %v1084
        %1128 = vmatprep.subr.bf16.mxu0 0
        %1129 = vmatpush1.bf16.msra.mxu0 %v1085
        %1130 = vmatprep.subr.bf16.mxu0 0
        %1131 = vmatpush1.bf16.msra.mxu0 %v1086
        %1132 = vmatprep.subr.bf16.mxu0 0
        %1133 = vmatpush1.bf16.msra.mxu0 %v1087
        %1134 = vmatprep.subr.bf16.mxu0 0
        %1135 = vmatpush1.bf16.msra.mxu0 %v1088
        %1136 = vmatprep.subr.bf16.mxu0 0
        %1137 = vmatpush1.bf16.msra.mxu0 %v1089
        %1138 = vmatprep.mubr.bf16.mxu0 %v977
        %1139 = vmatmul.mubr.bf16.gmra.mrb[0].mxu0 %v976
        %v1140 = vpop.f32.mrb[0].mxu0
        %v1141 = vadd.f32 0.0, %v1140
        %v1142 = vpop.f32.mrb[0].mxu0
        %v1143 = vpop.f32.mrb[0].mxu0
        %v1144 = vpop.f32.mrb[0].mxu0
        %1145 = vdwg.mxu0
        %v1146 = vadd.f32 %v975, %v1141
        %1147 = vst [vmem:[#allocation2] sm:$0xff] %v1146
        %p1148 = scmp.eq.s32.totalorder %s40, 1
        // Predicated region
        $region89: #{tpu_custom_call.1} parent=67 // pred_check
          %p1149 = pneg %p1148
        $region90: #{tpu_custom_call.1} parent=67 // pred_check_branch
          %1151 = sbr.rel (%p1149) target = $region92
        $region91: #{tpu_custom_call.1} parent=67 // pred_region
          %v1152 = vld [vmem:[#allocation2] sm:$0xff]
          %v1153 = vld [vmem:[%s631] sm:$0x1]
          %v1155 = vlaneseq
          %v1156 = vshrl.u32 %v1155, 7
          %v1157 = vsub.s32 0, %v1156
          %v1158 = vrot.slane %v1153, %v1157
          %v1160 = vadd.f32 %v1152, %v1158
          %v1161 = vrot.slane %v1160, 4
          %v1162 = vadd.f32 %v1160, %v1161
          %v1163 = vrot.slane %v1162, 2
          %v1164 = vadd.f32 %v1162, %v1163
          %v1165 = vrot.slane %v1164, 1
          %v1166 = vadd.f32 %v1164, %v1165
          %v1167 = vmul.f32 %v1166, 0.125
          %v1168 = vsub.f32 %v1160, %v1167
          %v1169 = vmul.f32 %v1168, %v1168
          %v1170 = vrot.slane %v1169, 4
          %v1171 = vadd.f32 %v1169, %v1170
          %v1172 = vrot.slane %v1171, 2
          %v1173 = vadd.f32 %v1171, %v1172
          %v1174 = vrot.slane %v1173, 1
          %v1175 = vadd.f32 %v1173, %v1174
          %v1176 = vmul.f32 %v1175, 0.125
          %v1177 = vadd.f32 %v1176, 1e-05
          %v1178 = vrsqrt.pop %v1177
          %v1179 = vld [vmem:[%s634] sm:$0x1]
          %v1180 = vmul.f32 %v1178, %v1179
          %v1181 = vlaneseq
          %v1182 = vshrl.u32 %v1181, 7
          %v1183 = vsub.s32 0, %v1182
          %v1184 = vrot.slane %v1180, %v1183
          %v1185 = vmul.f32 %v1168, %v1184
          %v1186 = vld [vmem:[%s637] sm:$0x1]
          %v1188 = vlaneseq
          %v1189 = vshrl.u32 %v1188, 7
          %v1190 = vsub.s32 0, %v1189
          %v1191 = vrot.slane %v1186, %v1190
          %v1193 = vadd.f32 %v1185, %v1191
          %s1194 = sld [smem:[#allocation4]]
          %vm1195 = vcmp.gt.f32.partialorder %v1193, 0.0
          %v1196 = vstv %s1194
          %v1197 = vmul.f32 %v1196, %v1193
          %v1198 = vsel %vm1195, %v1193, %v1197
          %v1199 = vld [vmem:[%s522] sm:$0xff]
          %v1200 = vadd.f32 %v1199, %v1198
          %1201 = vst [vmem:[%s611] sm:$0xff] %v1200
        $region92: #{tpu_custom_call.1} parent=67 // pred_fallthru
          _
        %s1202 = sand.u32 %s354, 1
        %s1203 = scalar_lea.sflag [#allocation7], %s1202
        %s1204 = sand.u32 %s354, 1
        %s1205 = smul.addr %s1204, 8
        %s1206 = scalar_lea.vmem [#allocation13], %s1205
        // Predicated region
        $region93: #{tpu_custom_call.1} parent=67 // pred_check
          %p1207 = pneg %p364
        $region94: #{tpu_custom_call.1} parent=67 // pred_check_branch
          %1209 = sbr.rel (%p1207) target = $region96
        $region95: #{tpu_custom_call.1} parent=67 // pred_region
          %s1211 = ssub.s32 128, 128
          %1212 = vsyncadd %s1203, %s1211
          %s1213 = smul.addr %s39, 128
          %s1214 = scalar_lea.hbm %s12, %s1213
          %s1216 = sshll.u32 %s1206, 4
          %s1217 = int_to_ptr.vmem [resolvable:$true] %s1216
          %1219 = dma.vmem_to_hbm [thread:$0]  %s1217, 128, %s1214, %s1203
        $region96: #{tpu_custom_call.1} parent=67 // pred_fallthru
          _
      $region68: #{tpu_custom_call.1} parent=5 // pred_fallthru
        _
      %p1220 = scmp.le.s32.totalorder 2, %s30
      // Predicated region
      $region97: #{tpu_custom_call.1} parent=5 // pred_check
        %p1221 = pneg %p1220
      $region98: #{tpu_custom_call.1} parent=5 // pred_check_branch
        %1223 = sbr.rel (%p1221) target = $region100
      $region99: #{tpu_custom_call.1} parent=5 // pred_region
        %s1224 = ssub.s32 %s30, 2
        // Predicated region
        $region101: #{tpu_custom_call.1} parent=99 // pred_check
          %p1225 = pneg %p370
        $region102: #{tpu_custom_call.1} parent=99 // pred_check_branch
          %1227 = sbr.rel (%p1225) target = $region104
        $region103: #{tpu_custom_call.1} parent=99 // pred_region
          %s1228 = sand.u32 %s355, 1
          %s1229 = scalar_lea.sflag [#allocation7], %s1228
          %s1230 = sand.u32 %s355, 1
          %s1231 = smul.addr %s1230, 8
          %s1232 = scalar_lea.vmem [#allocation13], %s1231
          %1233 = dma.done %s1229, 128
        $region104: #{tpu_custom_call.1} parent=99 // pred_fallthru
          _
      $region100: #{tpu_custom_call.1} parent=5 // pred_fallthru
        _
    $region6: #{tpu_custom_call.1} parent=1 // loop_footer
      %s34 = sadd.s32 1, %s30
    $region7: #{tpu_custom_call.1} parent=1 // loop_footer_branch
      %29 = sbr.rel target = $region3
    $region8: #{tpu_custom_call.1} parent=1 // loop_exit
      _
    %1234 = vsyncpa [#allocation6], 1
    %s1235 = scalar_lea.sflag [#allocation6], 1
    %1236 = vsyncpa %s1235, 1
    %1237 = vsyncpa [#allocation9], 1
    %s1238 = scalar_lea.sflag [#allocation9], 1
    %1239 = vsyncpa %s1238, 1
    %1240 = vsyncpa [#allocation12], 1
    %s1241 = scalar_lea.sflag [#allocation12], 1
    %1242 = vsyncpa %s1241, 1
    %1243 = vsyncpa [#allocation7], 1
    %s1244 = scalar_lea.sflag [#allocation7], 1
    %1245 = vsyncpa %s1244, 1

</llo_original>
